<compile_context>
chip_gen: v7x
topology: tpu7x:2x2x1
jax: 0.10.0
libtpu: 0.0.40
codegen_flags: <defaults>
</compile_context>

<pallas_src>
import functools

import jax
import jax.numpy as jnp
from jax.experimental import pallas as pl
from jax.experimental.pallas import tpu as pltpu


def _round_up(v: int, m: int) -> int:
    return ((v + m - 1) // m) * m


def _loss_prediction_kernel(x_ref, target_ref, unc_ref, out_ref,
                            acc_ce_ref, acc_sq_ref, tgt_col_ref, unc_col_ref,
                            *, ce_mult, lam, batch_total, strip):
    """Fused per-sample CE + MSE with cross-grid-step accumulation.

    x_ref:       (bt, C) logits (native dtype)    VMEM tile
    target_ref:  (1, bt) int32 labels, lane-dense VMEM tile
    unc_ref:     (1, bt) predicted loss,lane-dense VMEM tile
    out_ref:     (1, 1)  f32 scalar loss          (resident, written last step)
    acc_*_ref:   (1, 1)  f32 running sums         VMEM scratch
    *_col_ref:   (bt, 1) f32 sublane-dense copies VMEM scratch
    """
    step = pl.program_id(0)
    bt, c = x_ref.shape
    n_strips = bt // strip

    @pl.when(step == 0)
    def _init():
        acc_ce_ref[...] = jnp.zeros_like(acc_ce_ref)
        acc_sq_ref[...] = jnp.zeros_like(acc_sq_ref)

    # ---- Relayout lane-dense (1, bt) aux rows into sublane-dense (bt, 1) columns.
    # Static 128-wide chunks with an iota "identity" mask + lane reduce: no
    # transposes and no dynamic lane-offset slicing required.  f32 is exact for
    # class labels < 2^24.
    ch = min(128, bt)                      # bt is a multiple of 128 unless bt == B < 128
    eye = (jax.lax.broadcasted_iota(jnp.int32, (ch, ch), 0) ==
           jax.lax.broadcasted_iota(jnp.int32, (ch, ch), 1))
    for k in range(bt // ch):              # static unroll; tiny per-chunk temporaries
        sl = slice(k * ch, (k + 1) * ch)
        t_row = target_ref[:, sl].astype(jnp.float32)   # (1, ch)
        u_row = unc_ref[:, sl].astype(jnp.float32)      # (1, ch)
        tgt_col_ref[sl, :] = jnp.sum(jnp.where(eye, t_row, 0.0), axis=1, keepdims=True)
        unc_col_ref[sl, :] = jnp.sum(jnp.where(eye, u_row, 0.0), axis=1, keepdims=True)

    # ---- Loop-invariant index helpers (hoisted: JAX does not CSE broadcast_in_dim).
    cols = jax.lax.broadcasted_iota(jnp.int32, (strip, c), 1)            # class id per lane
    rows_in_strip = jax.lax.broadcasted_iota(jnp.int32, (strip, 1), 0)   # row id within strip
    tile_row0 = step * bt

    def process_strip(r0):
        # Strip-mined so the f32 working set stays small even when the DMA tile
        # (bt, C) is several MiB.  Upcast to f32 only after the VMEM load.
        xs = x_ref[pl.ds(r0, strip), :].astype(jnp.float32)              # (strip, C)
        tgt_col = tgt_col_ref[pl.ds(r0, strip), :].astype(jnp.int32)     # (strip, 1)
        unc_col = unc_col_ref[pl.ds(r0, strip), :]                       # (strip, 1)

        # Numerically-stable log-sum-exp and masked target-logit gather.
        m = jnp.max(xs, axis=-1, keepdims=True)                          # (strip, 1)
        lse = m + jnp.log(jnp.sum(jnp.exp(xs - m), axis=-1, keepdims=True))
        logit_t = jnp.sum(jnp.where(cols == tgt_col, xs, 0.0),
                          axis=-1, keepdims=True)                        # (strip, 1)
        ce = lse - logit_t

        # Mask rows past the true batch (ragged last tile streamed without any
        # host-side padding; garbage/NaN rows are blocked by the select).
        valid = (tile_row0 + r0 + rows_in_strip) < batch_total
        ce_m = jnp.where(valid, ce, 0.0)
        diff = jnp.where(valid, unc_col - ce, 0.0)

        acc_ce_ref[...] += jnp.sum(ce_m, keepdims=True)
        acc_sq_ref[...] += jnp.sum(diff * diff, keepdims=True)

    if n_strips == 1:
        process_strip(0)
    else:
        @pl.loop(0, n_strips)
        def _strips(s):
            process_strip(pl.multiple_of(s * strip, strip))

    @pl.when(step == pl.num_programs(0) - 1)
    def _finalize():
        inv_b = jnp.float32(1.0 / batch_total)
        out_ref[...] = (jnp.float32(ce_mult) * (acc_ce_ref[...] * inv_b) +
                        jnp.float32(lam) * (acc_sq_ref[...] * inv_b))


def loss_prediction(x, target, unc, *, lambda_=1.0, detach=True, ignore_ce_loss=False):
    """JAX/Pallas equivalent of LossPrediction.forward (features/classifier unused)."""
    b, c = x.shape
    ce_mult = 1.0 - float(bool(ignore_ce_loss))
    itemsize = jnp.dtype(x.dtype).itemsize
    LANE = 128

    # Generation-aware budgets (v7x: 64 MiB VMEM per TC; v5e/v6e: 128 MiB).
    try:
        vmem_cap = int(getattr(pltpu.get_tpu_info(), "vmem_capacity_bytes", 128 << 20))
    except Exception:
        vmem_cap = 64 << 20                       # conservative fallback
    small_vmem = vmem_cap <= (64 << 20)
    tile_target_bytes = (2 << 20) if small_vmem else (4 << 20)

    # --- batch-tile selection: multiple of 128 rows (or == B), ~2-4 MiB native
    # dtype, and >= ~4 grid steps for large batches so DMA/compute overlap.
    row_bytes = max(c * itemsize, 1)
    bt = max(LANE, min(2048, (tile_target_bytes // row_bytes) // LANE * LANE))
    bt = min(bt, max(LANE, _round_up(-(-b // 4), LANE)))
    if bt >= b:
        bt = b                                     # single tile: block dims == full dims
    grid_steps = (b + bt - 1) // bt                # NO host-side padding of x

    if bt >= 256 and bt % 256 == 0:
        strip = 256
    elif bt % 128 == 0:
        strip = 128
    else:
        strip = bt                                 # small-B single-tile case

    tgt2 = target.reshape(1, b).astype(jnp.int32)  # lane-dense aux arrays
    unc2 = unc.reshape(1, b)

    kernel = functools.partial(
        _loss_prediction_kernel,
        ce_mult=ce_mult, lam=float(lambda_), batch_total=b, strip=strip,
    )

    # --- VMEM budget: double-buffered native-dtype x tiles + lane-dense aux
    # tiles + (bt,1) column scratch + f32 strip working set, with slack; capped
    # well under physical VMEM.
    c_p = _round_up(c, LANE)
    x_block = _round_up(bt, 8) * c_p * itemsize
    aux_block = 8 * _round_up(bt, LANE) * 4
    col_scratch = 2 * _round_up(bt, 8) * LANE * 4
    strip_ws = 6 * strip * c_p * 4 + 2 * min(128, bt) * min(128, bt) * 4
    vmem_needed = 2 * x_block + 4 * aux_block + col_scratch + strip_ws
    vmem_limit = int(min(max(2 * vmem_needed + (4 << 20), 32 << 20),
                         min(vmem_cap * 3 // 4, 100 << 20)))

    unc_isize = jnp.dtype(unc.dtype).itemsize
    cost = pl.CostEstimate(
        flops=6 * b * c,
        transcendentals=b * c,
        bytes_accessed=b * c * itemsize + b * (4 + unc_isize) + 4,
    )

    out = pl.pallas_call(
        kernel,
        out_shape=jax.ShapeDtypeStruct((1, 1), jnp.float32),
        grid_spec=pltpu.PrefetchScalarGridSpec(
            num_scalar_prefetch=0,
            grid=(grid_steps,),
            in_specs=[
                pl.BlockSpec((bt, c), lambda i: (i, 0)),   # logits tile (native dtype)
                pl.BlockSpec((1, bt), lambda i: (0, i)),   # targets, lane-dense
                pl.BlockSpec((1, bt), lambda i: (0, i)),   # unc, lane-dense
            ],
            out_specs=pl.BlockSpec((1, 1), lambda i: (0, 0)),  # resident scalar
            scratch_shapes=[
                pltpu.VMEM((1, 1), jnp.float32),    # running sum of CE
                pltpu.VMEM((1, 1), jnp.float32),    # running sum of squared diff
                pltpu.VMEM((bt, 1), jnp.float32),   # sublane-dense targets (as f32)
                pltpu.VMEM((bt, 1), jnp.float32),   # sublane-dense unc
            ],
        ),
        compiler_params=pltpu.CompilerParams(
            dimension_semantics=("arbitrary",),     # batch axis carries the accumulators
            vmem_limit_bytes=vmem_limit,
        ),
        cost_estimate=cost,
    )(x, tgt2, unc2)
    return out[0, 0]


def _reference(x, target, unc, *, lambda_, ignore_ce_loss):
    """Pure-JAX reference mirroring the PyTorch forward."""
    x = x.astype(jnp.float32)
    logp = jax.nn.log_softmax(x, axis=-1)
    ce = -jnp.take_along_axis(logp, target.reshape(-1, 1), axis=-1).squeeze(-1)
    unc_loss = jnp.mean((unc.astype(jnp.float32) - ce) ** 2)
    ce_mult = 1.0 - float(bool(ignore_ce_loss))
    return ce_mult * jnp.mean(ce) + lambda_ * unc_loss


if __name__ == "__main__":
    key = jax.random.PRNGKey(0)
    lambda_ = 0.5

    def run_case(key, b, c):
        kx, kt, ku, key = jax.random.split(key, 4)
        x = jax.random.normal(kx, (b, c), dtype=jnp.float32)
        target = jax.random.randint(kt, (b,), 0, c, dtype=jnp.int32)
        unc = jax.random.normal(ku, (b,), dtype=jnp.float32) + 4.0  # "predicted loss"
        out = jax.block_until_ready(loss_prediction(x, target, unc, lambda_=lambda_))
        ref = _reference(x, target, unc, lambda_=lambda_, ignore_ce_loss=False)
        assert jnp.allclose(out, ref, rtol=1e-4, atol=1e-4), (b, c, out, ref)
        return key

    key = run_case(key, 8, 128)      # tiny, single tile
    key = run_case(key, 13, 100)     # single ragged tile, C not a lane multiple
    key = run_case(key, 300, 128)    # multi-step grid with ragged last tile (no host pad)
    key = run_case(key, 2500, 128)   # strip-mined tiles (bt=640, strip=128) + ragged tail

    print("KERNEL_OK")
</pallas_src>

<mosaic_0001>
module attributes {stable_mosaic.version = 11 : i64} {
  func.func @_loss_prediction_kernel(%arg0: i32, %arg1: memref<8x128xf32, #tpu.memory_space<vmem>>, %arg2: memref<1x8xi32, #tpu.memory_space<vmem>>, %arg3: memref<1x8xf32, #tpu.memory_space<vmem>>, %arg4: memref<1x1xf32, #tpu.memory_space<vmem>>, %arg5: memref<1x1xf32, #tpu.memory_space<vmem>>, %arg6: memref<1x1xf32, #tpu.memory_space<vmem>>, %arg7: memref<8x1xf32, #tpu.memory_space<vmem>>, %arg8: memref<8x1xf32, #tpu.memory_space<vmem>>) attributes {dimension_semantics = [#tpu.dimension_semantics<arbitrary>], iteration_bounds = array<i64: 1>, scalar_prefetch = 0 : i64, scratch_operands = 4 : i64, tpu.core_type = #tpu.core_type<tc>, window_params = [{transform_indices = @transform_0, window_bounds = array<i64: 8, 128>}, {transform_indices = @transform_1, window_bounds = array<i64: 1, 8>}, {transform_indices = @transform_2, window_bounds = array<i64: 1, 8>}, {pipeline_mode = #tpu.pipeline_mode<synchronous>, transform_indices = @transform_3, window_bounds = array<i64: 1, 1>}]} {
    %c0_i32 = arith.constant 0 : i32
    %0 = arith.cmpi eq, %arg0, %c0_i32 : i32
    %1 = arith.extui %0 : i1 to i32
    %c0_i32_0 = arith.constant 0 : i32
    %2 = arith.cmpi ne, %1, %c0_i32_0 : i32
    scf.if %2 {
      %cst_37 = arith.constant 0.000000e+00 : f32
      %76 = vector.broadcast %cst_37 : f32 to vector<1x1xf32>
      %c0_38 = arith.constant 0 : index
      %c0_39 = arith.constant 0 : index
      %77 = vector.load %arg5[%c0_38, %c0_39] : memref<1x1xf32, #tpu.memory_space<vmem>>, vector<1x1xf32>
      tpu.vector_store %arg5[%c0_38, %c0_39], %76 {strides = array<i32>} : memref<1x1xf32, #tpu.memory_space<vmem>>, vector<1x1xf32>,
      %cst_40 = arith.constant 0.000000e+00 : f32
      %78 = vector.broadcast %cst_40 : f32 to vector<1x1xf32>
      %c0_41 = arith.constant 0 : index
      %c0_42 = arith.constant 0 : index
      %79 = vector.load %arg6[%c0_41, %c0_42] : memref<1x1xf32, #tpu.memory_space<vmem>>, vector<1x1xf32>
      tpu.vector_store %arg6[%c0_41, %c0_42], %78 {strides = array<i32>} : memref<1x1xf32, #tpu.memory_space<vmem>>, vector<1x1xf32>,
    } else {
    }
    %3 = tpu.iota {dimensions = array<i32: 0>} : vector<8x8xi32>
    %4 = tpu.iota {dimensions = array<i32: 1>} : vector<8x8xi32>
    %5 = arith.cmpi eq, %3, %4 : vector<8x8xi32>
    %c0 = arith.constant 0 : index
    %c0_1 = arith.constant 0 : index
    %6 = vector.load %arg2[%c0, %c0_1] : memref<1x8xi32, #tpu.memory_space<vmem>>, vector<1x8xi32>
    %7 = arith.sitofp %6 : vector<1x8xi32> to vector<1x8xf32>
    %c0_2 = arith.constant 0 : index
    %c0_3 = arith.constant 0 : index
    %8 = vector.load %arg3[%c0_2, %c0_3] : memref<1x8xf32, #tpu.memory_space<vmem>>, vector<1x8xf32>
    %cst = arith.constant 0.000000e+00 : f32
    %9 = vector.shape_cast %7 : vector<1x8xf32> to vector<1x8xf32>
    %10 = vector.broadcast %9 : vector<1x8xf32> to vector<8x8xf32>
    %11 = vector.broadcast %cst : f32 to vector<8x8xf32>
    %12 = arith.select %5, %10, %11 : vector<8x8xi1>, vector<8x8xf32>
    %cst_4 = arith.constant dense<0.000000e+00> : vector<8xf32>
    %13 = vector.multi_reduction <add>, %12, %cst_4 [1] : vector<8x8xf32> to vector<8xf32>
    %14 = vector.shape_cast %13 : vector<8xf32> to vector<8x1xf32>
    %c0_5 = arith.constant 0 : index
    %c0_6 = arith.constant 0 : index
    %15 = vector.load %arg7[%c0_5, %c0_6] : memref<8x1xf32, #tpu.memory_space<vmem>>, vector<8x1xf32>
    tpu.vector_store %arg7[%c0_5, %c0_6], %14 {strides = array<i32>} : memref<8x1xf32, #tpu.memory_space<vmem>>, vector<8x1xf32>,
    %cst_7 = arith.constant 0.000000e+00 : f32
    %16 = vector.shape_cast %8 : vector<1x8xf32> to vector<1x8xf32>
    %17 = vector.broadcast %16 : vector<1x8xf32> to vector<8x8xf32>
    %18 = vector.broadcast %cst_7 : f32 to vector<8x8xf32>
    %19 = arith.select %5, %17, %18 : vector<8x8xi1>, vector<8x8xf32>
    %cst_8 = arith.constant dense<0.000000e+00> : vector<8xf32>
    %20 = vector.multi_reduction <add>, %19, %cst_8 [1] : vector<8x8xf32> to vector<8xf32>
    %21 = vector.shape_cast %20 : vector<8xf32> to vector<8x1xf32>
    %c0_9 = arith.constant 0 : index
    %c0_10 = arith.constant 0 : index
    %22 = vector.load %arg8[%c0_9, %c0_10] : memref<8x1xf32, #tpu.memory_space<vmem>>, vector<8x1xf32>
    tpu.vector_store %arg8[%c0_9, %c0_10], %21 {strides = array<i32>} : memref<8x1xf32, #tpu.memory_space<vmem>>, vector<8x1xf32>,
    %23 = tpu.iota {dimensions = array<i32: 1>} : vector<8x128xi32>
    %24 = tpu.iota {dimensions = array<i32: 0>} : vector<8x1xi32>
    %c8_i32 = arith.constant 8 : i32
    %25 = arith.muli %arg0, %c8_i32 : i32
    %c0_11 = arith.constant 0 : index
    %c0_12 = arith.constant 0 : index
    %26 = vector.load %arg1[%c0_11, %c0_12] : memref<8x128xf32, #tpu.memory_space<vmem>>, vector<8x128xf32>
    %c0_13 = arith.constant 0 : index
    %c0_14 = arith.constant 0 : index
    %27 = vector.load %arg7[%c0_13, %c0_14] : memref<8x1xf32, #tpu.memory_space<vmem>>, vector<8x1xf32>
    %28 = arith.fptosi %27 : vector<8x1xf32> to vector<8x1xi32>
    %c0_15 = arith.constant 0 : index
    %c0_16 = arith.constant 0 : index
    %29 = vector.load %arg8[%c0_15, %c0_16] : memref<8x1xf32, #tpu.memory_space<vmem>>, vector<8x1xf32>
    %cst_17 = arith.constant dense<0xFF800000> : vector<8xf32>
    %30 = vector.multi_reduction <maximumf>, %26, %cst_17 [1] : vector<8x128xf32> to vector<8xf32>
    %31 = vector.shape_cast %30 : vector<8xf32> to vector<8x1xf32>
    %32 = vector.broadcast %31 : vector<8x1xf32> to vector<8x128xf32>
    %33 = arith.subf %26, %32 : vector<8x128xf32>
    %34 = math.exp %33 : vector<8x128xf32>
    %cst_18 = arith.constant dense<0.000000e+00> : vector<8xf32>
    %35 = vector.multi_reduction <add>, %34, %cst_18 [1] : vector<8x128xf32> to vector<8xf32>
    %36 = vector.shape_cast %35 : vector<8xf32> to vector<8x1xf32>
    %37 = math.log %36 : vector<8x1xf32>
    %38 = arith.addf %31, %37 : vector<8x1xf32>
    %39 = vector.broadcast %28 : vector<8x1xi32> to vector<8x128xi32>
    %40 = arith.cmpi eq, %23, %39 : vector<8x128xi32>
    %cst_19 = arith.constant 0.000000e+00 : f32
    %41 = vector.broadcast %cst_19 : f32 to vector<8x128xf32>
    %42 = arith.select %40, %26, %41 : vector<8x128xi1>, vector<8x128xf32>
    %cst_20 = arith.constant dense<0.000000e+00> : vector<8xf32>
    %43 = vector.multi_reduction <add>, %42, %cst_20 [1] : vector<8x128xf32> to vector<8xf32>
    %44 = vector.shape_cast %43 : vector<8xf32> to vector<8x1xf32>
    %45 = arith.subf %38, %44 : vector<8x1xf32>
    %c0_i32_21 = arith.constant 0 : i32
    %46 = arith.addi %25, %c0_i32_21 : i32
    %47 = vector.broadcast %46 : i32 to vector<8x1xi32>
    %48 = arith.addi %47, %24 : vector<8x1xi32>
    %c8_i32_22 = arith.constant 8 : i32
    %49 = vector.broadcast %c8_i32_22 : i32 to vector<8x1xi32>
    %50 = arith.cmpi slt, %48, %49 : vector<8x1xi32>
    %cst_23 = arith.constant 0.000000e+00 : f32
    %51 = vector.broadcast %cst_23 : f32 to vector<8x1xf32>
    %52 = arith.select %50, %45, %51 : vector<8x1xi1>, vector<8x1xf32>
    %53 = arith.subf %29, %45 : vector<8x1xf32>
    %cst_24 = arith.constant 0.000000e+00 : f32
    %54 = vector.broadcast %cst_24 : f32 to vector<8x1xf32>
    %55 = arith.select %50, %53, %54 : vector<8x1xi1>, vector<8x1xf32>
    %c0_25 = arith.constant 0 : index
    %c0_26 = arith.constant 0 : index
    %56 = vector.load %arg5[%c0_25, %c0_26] : memref<1x1xf32, #tpu.memory_space<vmem>>, vector<1x1xf32>
    %57 = vector.shape_cast %52 : vector<8x1xf32> to vector<1x8x1xf32>
    %cst_27 = arith.constant dense<0.000000e+00> : vector<1xf32>
    %58 = vector.multi_reduction <add>, %57, %cst_27 [1, 2] : vector<1x8x1xf32> to vector<1xf32>
    %59 = vector.shape_cast %58 : vector<1xf32> to vector<1x1x1xf32>
    %60 = vector.extract %59[0, 0, 0] : f32 from vector<1x1x1xf32>
    %61 = vector.broadcast %60 : f32 to vector<1x1xf32>
    %62 = arith.addf %56, %61 : vector<1x1xf32>
    %c0_28 = arith.constant 0 : index
    %c0_29 = arith.constant 0 : index
    %63 = vector.load %arg5[%c0_28, %c0_29] : memref<1x1xf32, #tpu.memory_space<vmem>>, vector<1x1xf32>
    tpu.vector_store %arg5[%c0_28, %c0_29], %62 {strides = array<i32>} : memref<1x1xf32, #tpu.memory_space<vmem>>, vector<1x1xf32>,
    %c0_30 = arith.constant 0 : index
    %c0_31 = arith.constant 0 : index
    %64 = vector.load %arg6[%c0_30, %c0_31] : memref<1x1xf32, #tpu.memory_space<vmem>>, vector<1x1xf32>
    %65 = arith.mulf %55, %55 : vector<8x1xf32>
    %66 = vector.shape_cast %65 : vector<8x1xf32> to vector<1x8x1xf32>
    %cst_32 = arith.constant dense<0.000000e+00> : vector<1xf32>
    %67 = vector.multi_reduction <add>, %66, %cst_32 [1, 2] : vector<1x8x1xf32> to vector<1xf32>
    %68 = vector.shape_cast %67 : vector<1xf32> to vector<1x1x1xf32>
    %69 = vector.extract %68[0, 0, 0] : f32 from vector<1x1x1xf32>
    %70 = vector.broadcast %69 : f32 to vector<1x1xf32>
    %71 = arith.addf %64, %70 : vector<1x1xf32>
    %c0_33 = arith.constant 0 : index
    %c0_34 = arith.constant 0 : index
    %72 = vector.load %arg6[%c0_33, %c0_34] : memref<1x1xf32, #tpu.memory_space<vmem>>, vector<1x1xf32>
    tpu.vector_store %arg6[%c0_33, %c0_34], %71 {strides = array<i32>} : memref<1x1xf32, #tpu.memory_space<vmem>>, vector<1x1xf32>,
    %c0_i32_35 = arith.constant 0 : i32
    %73 = arith.cmpi eq, %arg0, %c0_i32_35 : i32
    %74 = arith.extui %73 : i1 to i32
    %c0_i32_36 = arith.constant 0 : i32
    %75 = arith.cmpi ne, %74, %c0_i32_36 : i32
    scf.if %75 {
      %c0_37 = arith.constant 0 : index
      %c0_38 = arith.constant 0 : index
      %76 = vector.load %arg5[%c0_37, %c0_38] : memref<1x1xf32, #tpu.memory_space<vmem>>, vector<1x1xf32>
      %cst_39 = arith.constant 1.250000e-01 : f32
      %77 = vector.broadcast %cst_39 : f32 to vector<1x1xf32>
      %78 = arith.mulf %76, %77 : vector<1x1xf32>
      %cst_40 = arith.constant 1.000000e+00 : f32
      %79 = vector.broadcast %cst_40 : f32 to vector<1x1xf32>
      %80 = arith.mulf %79, %78 : vector<1x1xf32>
      %c0_41 = arith.constant 0 : index
      %c0_42 = arith.constant 0 : index
      %81 = vector.load %arg6[%c0_41, %c0_42] : memref<1x1xf32, #tpu.memory_space<vmem>>, vector<1x1xf32>
      %cst_43 = arith.constant 1.250000e-01 : f32
      %82 = vector.broadcast %cst_43 : f32 to vector<1x1xf32>
      %83 = arith.mulf %81, %82 : vector<1x1xf32>
      %cst_44 = arith.constant 5.000000e-01 : f32
      %84 = vector.broadcast %cst_44 : f32 to vector<1x1xf32>
      %85 = arith.mulf %84, %83 : vector<1x1xf32>
      %86 = arith.addf %80, %85 : vector<1x1xf32>
      %c0_45 = arith.constant 0 : index
      %c0_46 = arith.constant 0 : index
      %87 = vector.load %arg4[%c0_45, %c0_46] : memref<1x1xf32, #tpu.memory_space<vmem>>, vector<1x1xf32>
      tpu.vector_store %arg4[%c0_45, %c0_46], %86 {strides = array<i32>} : memref<1x1xf32, #tpu.memory_space<vmem>>, vector<1x1xf32>,
    } else {
    }
    return
  }
  func.func @transform_0(%arg0: i32) -> (i32, i32) {
    %c0_i32 = arith.constant 0 : i32
    %c0_i32_0 = arith.constant 0 : i32
    return %arg0, %c0_i32 : i32, i32
  }
  func.func @transform_1(%arg0: i32) -> (i32, i32) {
    %c0_i32 = arith.constant 0 : i32
    %c0_i32_0 = arith.constant 0 : i32
    return %c0_i32, %arg0 : i32, i32
  }
  func.func @transform_2(%arg0: i32) -> (i32, i32) {
    %c0_i32 = arith.constant 0 : i32
    %c0_i32_0 = arith.constant 0 : i32
    return %c0_i32, %arg0 : i32, i32
  }
  func.func @transform_3(%arg0: i32) -> (i32, i32) {
    %c0_i32 = arith.constant 0 : i32
    %c0_i32_0 = arith.constant 0 : i32
    %c0_i32_1 = arith.constant 0 : i32
    return %c0_i32, %c0_i32_0 : i32, i32
  }
}

</mosaic_0001>

<llo_original>
// kernel: tpu_custom_call.1
$region0: #{tpu_custom_call.1}
  #allocation0 [shape = 'u32[]', space=smem, size = 0x4, offset = 0x4, fixed_abs, tag = 'smem constant byte address 0x4 - core index']
  #allocation1 [shape = 'u32[144,128]{1,0:T(1,128)}', space=vmem, size = 0x12000, scoped, tag = 'internal scratch']
  #allocation2 [shape = 'f32[1,1]{1,0:T(1,128)}', space=vmem, size = 0x200, scoped, tag = 'scratch operand']
  #allocation3 [shape = 'f32[1,1]{1,0:T(1,128)}', space=vmem, size = 0x200, scoped, tag = 'scratch operand']
  #allocation4 [shape = 'f32[8,1]{1,0:T(8,128)}', space=vmem, size = 0x1000, scoped, tag = 'scratch operand']
  #allocation5 [shape = 'f32[8,1]{1,0:T(8,128)}', space=vmem, size = 0x1000, scoped, tag = 'scratch operand']
  %s0 = inlined_call_operand.hbm [shape: f32[8,128], index: 0, kind: input, shape index: {}]
  %s1 = inlined_call_operand.vmem [shape: s32[1,8], index: 1, kind: input, shape index: {}]
  %s2 = inlined_call_operand.vmem [shape: f32[1,8], index: 2, kind: input, shape index: {}]
  %s3 = inlined_call_operand.hbm [shape: f32[1,1], index: 3, kind: output, shape index: {}]
  %s4 = sld [smem:[#allocation0]]
  $region34: #{tpu_custom_call.1} parent=0
    _
  %s6 = ssub.s32 1, %s4
  %s7 = scalar_select 0, %s6, %s4
  $region1: #{tpu_custom_call.1} parent=0
    #allocation6 [shape = 'u8[4096]{0}', space=vmem, size = 0x1000, scoped, tag = 'input window, operand 0, single buffered']
    #allocation7 [shape = 's32[1]{0}', space=sflag, size = 0x4, scoped, tag = 'scoped memory for tpu_custom_call.1']
    #allocation8 [shape = 's32[1]{0}', space=sflag, size = 0x4, scoped, tag = 'scoped memory for tpu_custom_call.1']
    #allocation9 [shape = 'u8[512]{0}', space=vmem, size = 0x400, scoped, tag = 'output window, operand 0, single buffered']
    %8 = vsyncpa [#allocation7], 0
    %9 = vsyncpa [#allocation8], 0
    // Predicated region
    $region2: #{tpu_custom_call.1} parent=1 // pred_check
      _
    $region3: #{tpu_custom_call.1} parent=1 // pred_check_branch
      %11 = sbr.rel (0) target = $region5
    $region4: #{tpu_custom_call.1} parent=1 // pred_region
      %s13 = ssub.s32 128, 128
      %14 = vsyncadd [#allocation7], %s13
      %s16 = sshll.u32 [#allocation6], 4
      %s17 = int_to_ptr.vmem [resolvable:$true] %s16
      %19 = dma.hbm_to_vmem [thread:$0]  %s0, 128, %s17, [#allocation7]
    $region5: #{tpu_custom_call.1} parent=1 // pred_fallthru
      _
    // Predicated region
    $region6: #{tpu_custom_call.1} parent=1 // pred_check
      _
    $region7: #{tpu_custom_call.1} parent=1 // pred_check_branch
      %21 = sbr.rel (0) target = $region9
    $region8: #{tpu_custom_call.1} parent=1 // pred_region
      _
    $region9: #{tpu_custom_call.1} parent=1 // pred_fallthru
      _
    // Predicated region
    $region10: #{tpu_custom_call.1} parent=1 // pred_check
      _
    $region11: #{tpu_custom_call.1} parent=1 // pred_check_branch
      %23 = sbr.rel (0) target = $region13
    $region12: #{tpu_custom_call.1} parent=1 // pred_region
      _
    $region13: #{tpu_custom_call.1} parent=1 // pred_fallthru
      _
    // Predicated region
    $region14: #{tpu_custom_call.1} parent=1 // pred_check
      _
    $region15: #{tpu_custom_call.1} parent=1 // pred_check_branch
      %25 = sbr.rel (0) target = $region17
    $region16: #{tpu_custom_call.1} parent=1 // pred_region
      %26 = dma.done [#allocation7], 128
    $region17: #{tpu_custom_call.1} parent=1 // pred_fallthru
      _
    %p27 = scmp.eq.s32.totalorder 0, 0
    // Predicated region
    $region18: #{tpu_custom_call.1} parent=1 // pred_check
      %p28 = pneg %p27
    $region19: #{tpu_custom_call.1} parent=1 // pred_check_branch
      %30 = sbr.rel (%p28) target = $region21
    $region20: #{tpu_custom_call.1} parent=1 // pred_region
      %vm31 = vcmask 0
      %32 = vst.msk [vmem:[#allocation2] sm:$0x1] %vm31, 0.0
      %33 = vst.msk [vmem:[#allocation3] sm:$0x1] %vm31, 0.0
    $region21: #{tpu_custom_call.1} parent=1 // pred_fallthru
      _
    %v34 = vlaneseq
    %v35 = vshrl.u32 %v34, 7
    %v36 = vlaneseq
    %v37 = vand.u32 %v36, 127
    %vm38 = vcmp.eq.s32.totalorder %v35, %v37
    %v39 = vld [vmem:[%s1] sm:$0x1]
    %v40 = vcvt.s32.f32 %v39
    %v41 = vld [vmem:[%s2] sm:$0x1]
    %v43 = vlaneseq
    %v44 = vshrl.u32 %v43, 7
    %v45 = vsub.s32 0, %v44
    %v46 = vrot.slane %v40, %v45
    %v48 = vsel %vm38, %v46, 0.0
    %vm49 = vcmask 64512
    %v50 = vsel %vm49, %v48, 0.0
    %51 = vadd.xlane.f32.xlu0 %v50
    %v52 = vpop.xlane.xlu0 %51
    %vm53 = vcmask 7168
    %54 = vst.msk [vmem:[#allocation4] sm:$0xff] %vm53, %v52
    %v56 = vlaneseq
    %v57 = vshrl.u32 %v56, 7
    %v58 = vsub.s32 0, %v57
    %v59 = vrot.slane %v41, %v58
    %v61 = vsel %vm38, %v59, 0.0
    %v62 = vsel %vm49, %v61, 0.0
    %63 = vadd.xlane.f32.xlu0 %v62
    %v64 = vpop.xlane.xlu0 %63
    %65 = vst.msk [vmem:[#allocation5] sm:$0xff] %vm53, %v64
    %s66 = smul.u32 0, 8
    %v67 = vld [vmem:[#allocation6] sm:$0xff]
    %v68 = vld [vmem:[#allocation4] sm:$0xff]
    %v69 = vcvt.f32.s32.to.zero.pseudo %v68
    %v70 = vld [vmem:[#allocation5] sm:$0xff]
    %71 = vmax.xlane.f32.xlu0 %v67
    %v72 = vpop.xlane.xlu0 %71
    %v73 = vsub.f32 %v67, %v72
    %v74 = vmul.f32 %v73, 1.442695
    %v75 = vpow.pop %v74
    %76 = vadd.xlane.f32.xlu0 %v75
    %v77 = vpop.xlane.xlu0 %76
    %v78 = vlog2.pop %v77
    %v79 = vmul.f32 %v78, 0.6931472
    %v80 = vadd.f32 %v72, %v79
    %81 = vset.pattern.permute.xlu0 0
    %82 = vperm.xlu0 %81, %v69
    %v83 = vpop.permute.xlu0 %82
    %vm84 = vcmp.eq.s32.totalorder %v37, %v83
    %v85 = vsel %vm84, %v67, 0.0
    %86 = vadd.xlane.f32.xlu0 %v85
    %v87 = vpop.xlane.xlu0 %86
    %v88 = vsub.f32 %v80, %v87
    %v89 = vstv %s66
    %v90 = vadd.s32 %v89, %v35
    %vm91 = vcmp.lt.s32.totalorder %v90, 8
    %v92 = vsel %vm91, %v88, 0.0
    %v93 = vsub.f32 %v70, %v88
    %v94 = vsel %vm91, %v93, 0.0
    %v95 = vld [vmem:[#allocation2] sm:$0x1]
    %v96 = vsel %vm53, %v92, 0.0
    %97 = vadd.xlane.f32.xlu0 %v96
    %v98 = vpop.xlane.xlu0 %97
    %v99 = vrot.slane %v98, 4
    %v100 = vadd.f32 %v98, %v99
    %v101 = vrot.slane %v100, 2
    %v102 = vadd.f32 %v100, %v101
    %v103 = vrot.slane %v102, 1
    %v104 = vadd.f32 %v102, %v103
    %s105 = vtos %v104
    %v106 = vstv %s105
    %v107 = vadd.f32 %v95, %v106
    %vm108 = vcmask 0
    %109 = vst.msk [vmem:[#allocation2] sm:$0x1] %vm108, %v107
    %v110 = vld [vmem:[#allocation3] sm:$0x1]
    %v111 = vmul.f32 %v94, %v94
    %v112 = vsel %vm53, %v111, 0.0
    %113 = vadd.xlane.f32.xlu0 %v112
    %v114 = vpop.xlane.xlu0 %113
    %v115 = vrot.slane %v114, 4
    %v116 = vadd.f32 %v114, %v115
    %v117 = vrot.slane %v116, 2
    %v118 = vadd.f32 %v116, %v117
    %v119 = vrot.slane %v118, 1
    %v120 = vadd.f32 %v118, %v119
    %s121 = vtos %v120
    %v122 = vstv %s121
    %v123 = vadd.f32 %v110, %v122
    %124 = vst.msk [vmem:[#allocation3] sm:$0x1] %vm108, %v123
    // Predicated region
    $region22: #{tpu_custom_call.1} parent=1 // pred_check
      %p125 = pneg %p27
    $region23: #{tpu_custom_call.1} parent=1 // pred_check_branch
      %127 = sbr.rel (%p125) target = $region25
    $region24: #{tpu_custom_call.1} parent=1 // pred_region
      %v128 = vld [vmem:[#allocation2] sm:$0x1]
      %v129 = vmul.f32 %v128, 0.125
      %v130 = vld [vmem:[#allocation3] sm:$0x1]
      %v131 = vmul.f32 %v130, 0.125
      %v132 = vmul.f32 %v131, 0.5
      %v133 = vadd.f32 %v129, %v132
      %134 = vst.msk [vmem:[#allocation9] sm:$0x1] %vm108, %v133
    $region25: #{tpu_custom_call.1} parent=1 // pred_fallthru
      _
    // Predicated region
    $region26: #{tpu_custom_call.1} parent=1 // pred_check
      _
    $region27: #{tpu_custom_call.1} parent=1 // pred_check_branch
      %136 = sbr.rel (0) target = $region29
    $region28: #{tpu_custom_call.1} parent=1 // pred_region
      %s138 = ssub.s32 16, 16
      %139 = vsyncadd [#allocation8], %s138
      %s141 = sshll.u32 [#allocation9], 4
      %s142 = int_to_ptr.vmem [resolvable:$true] %s141
      %144 = dma.vmem_to_hbm [thread:$0]  %s142, 16, %s3, [#allocation8]
    $region29: #{tpu_custom_call.1} parent=1 // pred_fallthru
      _
    // Predicated region
    $region30: #{tpu_custom_call.1} parent=1 // pred_check
      _
    $region31: #{tpu_custom_call.1} parent=1 // pred_check_branch
      %146 = sbr.rel (0) target = $region33
    $region32: #{tpu_custom_call.1} parent=1 // pred_region
      %147 = dma.done [#allocation8], 16
    $region33: #{tpu_custom_call.1} parent=1 // pred_fallthru
      _
    %148 = vsyncpa [#allocation7], 1
    %149 = vsyncpa [#allocation8], 1

</llo_original>
